<compile_context>
chip_gen: v6e
topology: v6e:2x2x1
jax: 0.10.0
libtpu: 0.0.40
codegen_flags: <defaults>
</compile_context>

<pallas_src>
import jax
import jax.numpy as jnp
from jax.experimental import pallas as pl
from jax.experimental.pallas import tpu as pltpu


def _upconv_kernel(x_ref, a_ref, w_ref, b_ref, o_ref):
    # x_ref: (1, H*W, Cin)   bf16   flattened low-res input for this batch element
    # a_ref: (TM, H*W)       bf16   rows of the bilinear-upsample operator for this band
    # w_ref: (Cin, Cp)       bf16   1x1 conv weight, Cout zero-padded to Cp (mult of 128)
    # b_ref: (1, Cp)         f32    conv bias, zero-padded
    # o_ref: (1, TM, Cp)     f32    lane-dense output band
    y = jnp.dot(x_ref[0], w_ref[...], preferred_element_type=jnp.float32)   # (H*W, Cp)
    y = y.astype(jnp.bfloat16)
    out = jnp.dot(a_ref[...], y, preferred_element_type=jnp.float32)        # (TM, Cp)
    o_ref[0] = out + b_ref[...]                                             # f32 epilogue


def _interp_matrix(n_in, n_out):
    """1-D bilinear interpolation operator, PyTorch align_corners=True semantics."""
    if n_in == 1:
        return jnp.ones((n_out, 1), jnp.float32)
    src = jnp.arange(n_out, dtype=jnp.float32) * ((n_in - 1) / (n_out - 1))
    i0 = jnp.clip(jnp.floor(src), 0, n_in - 1).astype(jnp.int32)
    i1 = jnp.minimum(i0 + 1, n_in - 1)
    t = src - i0.astype(jnp.float32)
    rows = jnp.arange(n_out)
    m = jnp.zeros((n_out, n_in), jnp.float32)
    m = m.at[rows, i0].add(1.0 - t)
    m = m.at[rows, i1].add(t)
    return m


def _pick_row_band(p):
    """Largest output-row band <= 1024 that divides p and still leaves >= 2 bands."""
    for tm in (1024, 512, 256, 128, 64, 32, 16, 8):
        if p % tm == 0 and p // tm >= 2:
            return tm
    return p


def output_block_forward(x_nchw, conv_weight, conv_bias):
    """Forward pass matching output_block.forward: bilinear x2 upsample + 1x1 conv."""
    N, Cin, H, W = x_nchw.shape
    Cout = conv_weight.shape[0]
    assert conv_weight.shape == (Cout, Cin, 1, 1)
    Ho, Wo = 2 * H, 2 * W
    P = Ho * Wo                              # output pixels per image
    Cp = ((Cout + 127) // 128) * 128         # lane-dense padded channel count
    TM = _pick_row_band(P)
    n_bands = P // TM

    # Fixed bilinear-upsample operator (shape-only constant), bf16 for the MXU.
    a_h = _interp_matrix(H, Ho)
    a_w = _interp_matrix(W, Wo)
    a_full = jnp.kron(a_h, a_w).astype(jnp.bfloat16)            # (P, H*W)

    # 1x1 conv weight -> (Cin, Cp) bf16, bias -> (1, Cp) f32 (zero-padded lanes).
    w2d = jnp.transpose(conv_weight[:, :, 0, 0], (1, 0))        # (Cin, Cout)
    wcp = jnp.zeros((Cin, Cp), jnp.bfloat16).at[:, :Cout].set(w2d.astype(jnp.bfloat16))
    bcp = jnp.zeros((1, Cp), jnp.float32).at[0, :Cout].set(conv_bias.astype(jnp.float32))

    # NCHW -> (N, H*W, Cin) bf16 (channels-last so the conv is a plain matmul).
    x2d = jnp.transpose(x_nchw, (0, 2, 3, 1)).reshape(N, H * W, Cin).astype(jnp.bfloat16)

    out = pl.pallas_call(
        _upconv_kernel,
        out_shape=jax.ShapeDtypeStruct((N, P, Cp), jnp.float32),
        grid_spec=pltpu.PrefetchScalarGridSpec(
            num_scalar_prefetch=0,
            grid=(N, n_bands),
            in_specs=[
                pl.BlockSpec((1, H * W, Cin), lambda n, m: (n, 0, 0)),
                pl.BlockSpec((TM, H * W), lambda n, m: (m, 0)),
                pl.BlockSpec((Cin, Cp), lambda n, m: (0, 0)),
                pl.BlockSpec((1, Cp), lambda n, m: (0, 0)),
            ],
            out_specs=pl.BlockSpec((1, TM, Cp), lambda n, m: (n, m, 0)),
        ),
        compiler_params=pltpu.CompilerParams(
            dimension_semantics=("parallel", "parallel")),
    )(x2d, a_full, wcp, bcp)

    # Strip channel padding, restore NCHW to match the PyTorch convention.
    out = out[:, :, :Cout].reshape(N, Ho, Wo, Cout)
    return jnp.transpose(out, (0, 3, 1, 2))


def _reference(x, w, b):
    """Independent f32 reference: gather-based bilinear (align_corners=True) + 1x1 conv."""
    N, Cin, H, W = x.shape
    Ho, Wo = 2 * H, 2 * W
    g = x.astype(jnp.float32)

    ys = jnp.arange(Ho, dtype=jnp.float32) * ((H - 1) / (Ho - 1))
    xs = jnp.arange(Wo, dtype=jnp.float32) * ((W - 1) / (Wo - 1))
    y0 = jnp.clip(jnp.floor(ys), 0, H - 1).astype(jnp.int32)
    y1 = jnp.minimum(y0 + 1, H - 1)
    ty = ys - y0.astype(jnp.float32)
    x0 = jnp.clip(jnp.floor(xs), 0, W - 1).astype(jnp.int32)
    x1 = jnp.minimum(x0 + 1, W - 1)
    tx = xs - x0.astype(jnp.float32)

    r0 = g[:, :, y0, :]
    r1 = g[:, :, y1, :]
    gy = r0 * (1.0 - ty)[None, None, :, None] + r1 * ty[None, None, :, None]   # (N,Cin,Ho,W)
    c0 = gy[:, :, :, x0]
    c1 = gy[:, :, :, x1]
    up = c0 * (1.0 - tx)[None, None, None, :] + c1 * tx[None, None, None, :]   # (N,Cin,Ho,Wo)

    y = jnp.einsum('oc,nchw->nohw', w[:, :, 0, 0].astype(jnp.float32), up)
    return y + b.astype(jnp.float32)[None, :, None, None]


if __name__ == "__main__":
    key = jax.random.PRNGKey(0)
    k_x, k_w, k_b = jax.random.split(key, 3)

    N, Cin, Cout, H, W = 2, 4, 8, 16, 16

    x = jax.random.normal(k_x, (N, Cin, H, W), dtype=jnp.float32)
    # PyTorch-style Conv2d init: U(-1/sqrt(fan_in), 1/sqrt(fan_in)), fan_in = Cin*1*1.
    bound = 1.0 / (Cin ** 0.5)
    weight = jax.random.uniform(k_w, (Cout, Cin, 1, 1), minval=-bound, maxval=bound,
                                dtype=jnp.float32)
    bias = jax.random.uniform(k_b, (Cout,), minval=-bound, maxval=bound,
                              dtype=jnp.float32)

    out = output_block_forward(x, weight, bias)
    out = jax.block_until_ready(out)

    ref = _reference(x, weight, bias)
    assert out.shape == (N, Cout, 2 * H, 2 * W)
    max_err = float(jnp.max(jnp.abs(out - ref)))
    # bf16 MXU operands with f32 accumulation -> tolerance loosened vs pure f32.
    assert max_err < 5e-2, f"max abs error {max_err}"

    print("KERNEL_OK")
</pallas_src>

<mosaic_0001>
module attributes {stable_mosaic.version = 11 : i64} {
  func.func @_upconv_kernel(%arg0: i32, %arg1: i32, %arg2: memref<1x256x4xbf16, #tpu.memory_space<vmem>>, %arg3: memref<512x256xbf16, #tpu.memory_space<vmem>>, %arg4: memref<4x128xbf16, #tpu.memory_space<vmem>>, %arg5: memref<1x128xf32, #tpu.memory_space<vmem>>, %arg6: memref<1x512x128xf32, #tpu.memory_space<vmem>>) attributes {dimension_semantics = [#tpu.dimension_semantics<parallel>, #tpu.dimension_semantics<parallel>], iteration_bounds = array<i64: 2, 2>, scalar_prefetch = 0 : i64, scratch_operands = 0 : i64, tpu.core_type = #tpu.core_type<tc>, window_params = [{transform_indices = @transform_0, window_bounds = array<i64: 1, 256, 4>}, {transform_indices = @transform_1, window_bounds = array<i64: 512, 256>}, {pipeline_mode = #tpu.pipeline_mode<synchronous>, transform_indices = @transform_2, window_bounds = array<i64: 4, 128>}, {pipeline_mode = #tpu.pipeline_mode<synchronous>, transform_indices = @transform_3, window_bounds = array<i64: 1, 128>}, {transform_indices = @transform_4, window_bounds = array<i64: 1, 512, 128>}]} {
    %c0 = arith.constant 0 : index
    %c0_0 = arith.constant 0 : index
    %c0_1 = arith.constant 0 : index
    %0 = vector.load %arg2[%c0, %c0_0, %c0_1] : memref<1x256x4xbf16, #tpu.memory_space<vmem>>, vector<1x256x4xbf16>
    %1 = vector.shape_cast %0 : vector<1x256x4xbf16> to vector<256x4xbf16>
    %c0_2 = arith.constant 0 : index
    %c0_3 = arith.constant 0 : index
    %2 = vector.load %arg4[%c0_2, %c0_3] : memref<4x128xbf16, #tpu.memory_space<vmem>>, vector<4x128xbf16>
    %cst = arith.constant dense<0.000000e+00> : vector<256x128xf32>
    %3 = tpu.matmul %1, %2, %cst {dimension_numbers = #tpu.dot_dimension_numbers<[1], [0], [0], [1], [0, 0, 1, 1], [], []>} : vector<256x4xbf16>, vector<4x128xbf16>, vector<256x128xf32> -> vector<256x128xf32>
    %4 = arith.truncf %3 : vector<256x128xf32> to vector<256x128xbf16>
    %c0_4 = arith.constant 0 : index
    %c0_5 = arith.constant 0 : index
    %5 = vector.load %arg3[%c0_4, %c0_5] : memref<512x256xbf16, #tpu.memory_space<vmem>>, vector<512x256xbf16>
    %cst_6 = arith.constant dense<0.000000e+00> : vector<512x128xf32>
    %6 = tpu.matmul %5, %4, %cst_6 {dimension_numbers = #tpu.dot_dimension_numbers<[1], [0], [0], [1], [0, 0, 1, 1], [], []>} : vector<512x256xbf16>, vector<256x128xbf16>, vector<512x128xf32> -> vector<512x128xf32>
    %c0_7 = arith.constant 0 : index
    %c0_8 = arith.constant 0 : index
    %7 = vector.load %arg5[%c0_7, %c0_8] : memref<1x128xf32, #tpu.memory_space<vmem>>, vector<1x128xf32>
    %8 = vector.broadcast %7 : vector<1x128xf32> to vector<512x128xf32>
    %9 = arith.addf %6, %8 : vector<512x128xf32>
    %c0_9 = arith.constant 0 : index
    %c0_10 = arith.constant 0 : index
    %c0_11 = arith.constant 0 : index
    %10 = vector.load %arg6[%c0_9, %c0_10, %c0_11] : memref<1x512x128xf32, #tpu.memory_space<vmem>>, vector<1x512x128xf32>
    %11 = vector.shape_cast %10 : vector<1x512x128xf32> to vector<512x128xf32>
    %12 = vector.shape_cast %9 : vector<512x128xf32> to vector<1x512x128xf32>
    tpu.vector_store %arg6[%c0_9, %c0_10, %c0_11], %12 {strides = array<i32>} : memref<1x512x128xf32, #tpu.memory_space<vmem>>, vector<1x512x128xf32>,
    return
  }
  func.func @transform_0(%arg0: i32, %arg1: i32) -> (i32, i32, i32) {
    %c0_i32 = arith.constant 0 : i32
    %c0_i32_0 = arith.constant 0 : i32
    %c0_i32_1 = arith.constant 0 : i32
    return %arg0, %c0_i32, %c0_i32_0 : i32, i32, i32
  }
  func.func @transform_1(%arg0: i32, %arg1: i32) -> (i32, i32) {
    %c0_i32 = arith.constant 0 : i32
    %c0_i32_0 = arith.constant 0 : i32
    return %arg1, %c0_i32 : i32, i32
  }
  func.func @transform_2(%arg0: i32, %arg1: i32) -> (i32, i32) {
    %c0_i32 = arith.constant 0 : i32
    %c0_i32_0 = arith.constant 0 : i32
    %c0_i32_1 = arith.constant 0 : i32
    return %c0_i32, %c0_i32_0 : i32, i32
  }
  func.func @transform_3(%arg0: i32, %arg1: i32) -> (i32, i32) {
    %c0_i32 = arith.constant 0 : i32
    %c0_i32_0 = arith.constant 0 : i32
    %c0_i32_1 = arith.constant 0 : i32
    return %c0_i32, %c0_i32_0 : i32, i32
  }
  func.func @transform_4(%arg0: i32, %arg1: i32) -> (i32, i32, i32) {
    %c0_i32 = arith.constant 0 : i32
    %c0_i32_0 = arith.constant 0 : i32
    return %arg0, %arg1, %c0_i32 : i32, i32, i32
  }
}

</mosaic_0001>

<llo_original>
// kernel: tpu_custom_call.1
$region0: #{tpu_custom_call.1}
  #allocation0 [shape = 'u32[]', space=smem, size = 0x4, offset = 0x4, fixed_abs, tag = 'smem constant byte address 0x4 - core index']
  #allocation1 [shape = 'u32[144,128]{1,0:T(1,128)}', space=vmem, size = 0x12000, scoped, tag = 'internal scratch']
  %s0 = inlined_call_operand.vmem [shape: bf16[2,256,4], index: 0, kind: input, shape index: {}]
  %s1 = inlined_call_operand.hbm [shape: bf16[1024,256], index: 1, kind: input, shape index: {}]
  %s2 = inlined_call_operand.vmem [shape: bf16[4,128], index: 2, kind: input, shape index: {}]
  %s3 = inlined_call_operand.vmem [shape: f32[1,128], index: 3, kind: input, shape index: {}]
  %s4 = inlined_call_operand.hbm [shape: f32[2,1024,128], index: 4, kind: output, shape index: {}]
  %s5 = sld [smem:[#allocation0]]
  $region53: #{tpu_custom_call.1} parent=0
    _
  %s7 = ssub.s32 1, %s5
  %s8 = scalar_select 0, %s7, %s5
  $region1: #{tpu_custom_call.1} parent=0
    #allocation2 [shape = 'u8[524288]{0}', space=vmem, size = 0x80000, scoped, tag = 'input window, operand 1']
    #allocation3 [shape = 's32[2]{0}', space=sflag, size = 0x8, scoped, tag = 'scoped memory for tpu_custom_call.1']
    #allocation4 [shape = 's32[2]{0}', space=sflag, size = 0x8, scoped, tag = 'scoped memory for tpu_custom_call.1']
    #allocation5 [shape = 'u8[524288]{0}', space=vmem, size = 0x80000, scoped, tag = 'output window, operand 0']
    %9 = vsyncpa [#allocation3], 0
    %s10 = scalar_lea.sflag [#allocation3], 1
    %11 = vsyncpa %s10, 0
    %12 = vsyncpa [#allocation4], 0
    %s13 = scalar_lea.sflag [#allocation4], 1
    %14 = vsyncpa %s13, 0
    loop: start=0, step=1, limit=6
    $region2: #{tpu_custom_call.1} parent=1 // loop_pre_header
      _
    $region3: #{tpu_custom_call.1} parent=1 // loop_header
      %s16 = sphi 0, %s20
      %p17 = scmp.ge.s32.totalorder %s16, 6
      %s23 = sphi 0, %s35
      %s24 = sphi 0, %s31
      %s25 = sphi 0, %s23
      %s26 = sphi 0, %s24
      %s27 = sphi 0, %s25
      %s28 = sphi 0, %s26
      %s38 = sphi 0, %s40
      %s41 = sphi 0, %s38
      %s42 = sphi 0, %s41
      %s58 = sphi 0, %s42
      %s64 = sphi 0, %s66
      %s67 = sphi 0, %s64
      %s68 = sphi 0, %s67
      %s84 = sphi 0, %s68
      %s88 = sphi 0, %s88
      %s90 = sphi 0, %s88
      %s91 = sphi 0, %s90
      %s105 = sphi 0, %s91
      %s109 = sphi 0, %s109
      %s111 = sphi 0, %s109
      %s112 = sphi 0, %s111
      %s126 = sphi 0, %s112
      %s134 = sphi 0, %s136
      %s137 = sphi 0, %s134
      %s138 = sphi 0, %s137
      %s154 = sphi 0, %s138
    $region4: #{tpu_custom_call.1} parent=1 // loop_header_branch
      %19 = sbr.rel (%p17) target = $region8
    $region5: #{tpu_custom_call.1} parent=1 // loop_body
      %s21 = ssub.s32 %s16, 1
      %s22 = ssub.s32 %s16, 2
      %s29 = sadd.s32 1, %s24
      %p30 = scmp.ge.s32.totalorder %s29, 2
      %s31 = scalar_select %p30, 0, %s29
      %s32 = sadd.s32 1, %s23
      %s33 = scalar_select %p30, %s32, %s23
      %p34 = scmp.ge.s32.totalorder %s33, 2
      %s35 = scalar_select %p34, 0, %s33
      %s36 = ssub.s32 %s23, %s35
      %p37 = scmp.eq.s32.totalorder %s36, 0
      %s39 = sadd.s32 %s38, 1
      %s40 = scalar_select %p37, %s38, %s39
      %p43 = pneg %p37
      %p44 = scmp.eq.s32.totalorder %s16, 3
      %p45 = por %p43, %p44
      %p46 = scmp.ne.s32.totalorder %s38, %s41
      %p47 = scmp.eq.s32.totalorder %s16, 0
      %p48 = por %p46, %p47
      %p49 = scmp.ne.s32.totalorder %s38, %s41
      %p50 = scmp.eq.s32.totalorder %s21, 3
      %p51 = por %p49, %p50
      %p52 = scmp.ne.s32.totalorder %s41, %s42
      %p53 = scmp.eq.s32.totalorder %s21, 0
      %p54 = por %p52, %p53
      %p55 = scmp.ne.s32.totalorder %s41, %s42
      %p56 = scmp.eq.s32.totalorder %s22, 3
      %p57 = por %p55, %p56
      %p59 = scmp.ne.s32.totalorder %s42, %s58
      %p60 = scmp.eq.s32.totalorder %s22, 0
      %p61 = por %p59, %p60
      %s62 = ssub.s32 %s24, %s31
      %p63 = scmp.eq.s32.totalorder %s62, 0
      %s65 = sadd.s32 %s64, 1
      %s66 = scalar_select %p63, %s64, %s65
      %p69 = pneg %p63
      %p70 = scmp.eq.s32.totalorder %s16, 3
      %p71 = por %p69, %p70
      %p72 = scmp.ne.s32.totalorder %s64, %s67
      %p73 = scmp.eq.s32.totalorder %s16, 0
      %p74 = por %p72, %p73
      %p75 = scmp.ne.s32.totalorder %s64, %s67
      %p76 = scmp.eq.s32.totalorder %s21, 3
      %p77 = por %p75, %p76
      %p78 = scmp.ne.s32.totalorder %s67, %s68
      %p79 = scmp.eq.s32.totalorder %s21, 0
      %p80 = por %p78, %p79
      %p81 = scmp.ne.s32.totalorder %s67, %s68
      %p82 = scmp.eq.s32.totalorder %s22, 3
      %p83 = por %p81, %p82
      %p85 = scmp.ne.s32.totalorder %s68, %s84
      %p86 = scmp.eq.s32.totalorder %s22, 0
      %p87 = por %p85, %p86
      %s89 = sadd.s32 %s88, 1
      %p92 = scmp.eq.s32.totalorder %s16, 3
      %p93 = scmp.ne.s32.totalorder %s88, %s90
      %p94 = scmp.eq.s32.totalorder %s16, 0
      %p95 = por %p93, %p94
      %p96 = scmp.ne.s32.totalorder %s88, %s90
      %p97 = scmp.eq.s32.totalorder %s21, 3
      %p98 = por %p96, %p97
      %p99 = scmp.ne.s32.totalorder %s90, %s91
      %p100 = scmp.eq.s32.totalorder %s21, 0
      %p101 = por %p99, %p100
      %p102 = scmp.ne.s32.totalorder %s90, %s91
      %p103 = scmp.eq.s32.totalorder %s22, 3
      %p104 = por %p102, %p103
      %p106 = scmp.ne.s32.totalorder %s91, %s105
      %p107 = scmp.eq.s32.totalorder %s22, 0
      %p108 = por %p106, %p107
      %s110 = sadd.s32 %s109, 1
      %p113 = scmp.eq.s32.totalorder %s16, 3
      %p114 = scmp.ne.s32.totalorder %s109, %s111
      %p115 = scmp.eq.s32.totalorder %s16, 0
      %p116 = por %p114, %p115
      %p117 = scmp.ne.s32.totalorder %s109, %s111
      %p118 = scmp.eq.s32.totalorder %s21, 3
      %p119 = por %p117, %p118
      %p120 = scmp.ne.s32.totalorder %s111, %s112
      %p121 = scmp.eq.s32.totalorder %s21, 0
      %p122 = por %p120, %p121
      %p123 = scmp.ne.s32.totalorder %s111, %s112
      %p124 = scmp.eq.s32.totalorder %s22, 3
      %p125 = por %p123, %p124
      %p127 = scmp.ne.s32.totalorder %s112, %s126
      %p128 = scmp.eq.s32.totalorder %s22, 0
      %p129 = por %p127, %p128
      %s130 = ssub.s32 %s23, %s35
      %s131 = ssub.s32 %s24, %s31
      %s132 = sor.u32 %s130, %s131
      %p133 = scmp.eq.s32.totalorder %s132, 0
      %s135 = sadd.s32 %s134, 1
      %s136 = scalar_select %p133, %s134, %s135
      %p139 = pneg %p133
      %p140 = scmp.eq.s32.totalorder %s16, 3
      %p141 = por %p139, %p140
      %p142 = scmp.ne.s32.totalorder %s134, %s137
      %p143 = scmp.eq.s32.totalorder %s16, 0
      %p144 = por %p142, %p143
      %p145 = scmp.ne.s32.totalorder %s134, %s137
      %p146 = scmp.eq.s32.totalorder %s21, 3
      %p147 = por %p145, %p146
      %p148 = scmp.ne.s32.totalorder %s137, %s138
      %p149 = scmp.eq.s32.totalorder %s21, 0
      %p150 = por %p148, %p149
      %p151 = scmp.ne.s32.totalorder %s137, %s138
      %p152 = scmp.eq.s32.totalorder %s22, 3
      %p153 = por %p151, %p152
      %p155 = scmp.ne.s32.totalorder %s138, %s154
      %p156 = scmp.eq.s32.totalorder %s22, 0
      %p157 = por %p155, %p156
      %p158 = scmp.le.s32.totalorder 1, %s16
      %p159 = scmp.lt.s32.totalorder %s16, 5
      %p160 = pnand %p158, %p159
      %p161 = pneg %p160
      // Predicated region
      $region9: #{tpu_custom_call.1} parent=5 // pred_check
        _
      $region10: #{tpu_custom_call.1} parent=5 // pred_check_branch
        %163 = sbr.rel (%p160) target = $region12
      $region11: #{tpu_custom_call.1} parent=5 // pred_region
        %s164 = ssub.s32 %s16, 1
        // Predicated region
        $region13: #{tpu_custom_call.1} parent=11 // pred_check
          %p165 = pneg %p101
        $region14: #{tpu_custom_call.1} parent=11 // pred_check_branch
          %167 = sbr.rel (%p165) target = $region16
        $region15: #{tpu_custom_call.1} parent=11 // pred_region
          _
        $region16: #{tpu_custom_call.1} parent=11 // pred_fallthru
          _
        // Predicated region
        $region17: #{tpu_custom_call.1} parent=11 // pred_check
          %p168 = pneg %p122
        $region18: #{tpu_custom_call.1} parent=11 // pred_check_branch
          %170 = sbr.rel (%p168) target = $region20
        $region19: #{tpu_custom_call.1} parent=11 // pred_region
          _
        $region20: #{tpu_custom_call.1} parent=11 // pred_fallthru
          _
      $region12: #{tpu_custom_call.1} parent=5 // pred_fallthru
        _
      %p171 = scmp.lt.s32.totalorder %s16, 4
      // Predicated region
      $region21: #{tpu_custom_call.1} parent=5 // pred_check
        %p172 = pneg %p171
      $region22: #{tpu_custom_call.1} parent=5 // pred_check_branch
        %174 = sbr.rel (%p172) target = $region24
      $region23: #{tpu_custom_call.1} parent=5 // pred_region
        // Predicated region
        $region25: #{tpu_custom_call.1} parent=23 // pred_check
          %p175 = pneg %p48
        $region26: #{tpu_custom_call.1} parent=23 // pred_check_branch
          %177 = sbr.rel (%p175) target = $region28
        $region27: #{tpu_custom_call.1} parent=23 // pred_region
          %p178 = scmp.lt.s32.totalorder %s23, 1
          %s179 = scalar_select %p178, %s23, 1
          %s180 = smul.addr %s179, 32
          %s181 = smul.addr %s180, 4
          %s182 = scalar_lea.vmem %s0, %s181
        $region28: #{tpu_custom_call.1} parent=23 // pred_fallthru
          _
        // Predicated region
        $region29: #{tpu_custom_call.1} parent=23 // pred_check
          %p183 = pneg %p74
        $region30: #{tpu_custom_call.1} parent=23 // pred_check_branch
          %185 = sbr.rel (%p183) target = $region32
        $region31: #{tpu_custom_call.1} parent=23 // pred_region
          %s186 = sand.u32 %s64, 1
          %s187 = scalar_lea.sflag [#allocation3], %s186
          %s188 = sand.u32 %s64, 1
          %s189 = smul.addr %s188, 512
          %s190 = scalar_lea.vmem [#allocation2], %s189
          %s191 = smul.u32 64, %s24
          %s193 = ssub.s32 8192, 8192
          %194 = vsyncadd %s187, %s193
          %s195 = smul.addr %s191, 2
          %s196 = smul.addr %s195, 64
          %s197 = scalar_lea.hbm %s1, %s196
          %s198 = sshll.u32 %s190, 4
          %s199 = int_to_ptr.vmem [resolvable:$true] %s198
          %204 = dma.hbm_to_vmem [thread:$0]  %s197, 8192, %s199, %s187, 128, 128, 8
        $region32: #{tpu_custom_call.1} parent=23 // pred_fallthru
          _
      $region24: #{tpu_custom_call.1} parent=5 // pred_fallthru
        _
      %p205 = scmp.le.s32.totalorder 1, %s16
      %p206 = scmp.lt.s32.totalorder %s16, 5
      %p207 = pnand %p205, %p206
      %p208 = pneg %p207
      // Predicated region
      $region33: #{tpu_custom_call.1} parent=5 // pred_check
        _
      $region34: #{tpu_custom_call.1} parent=5 // pred_check_branch
        %210 = sbr.rel (%p207) target = $region36
      $region35: #{tpu_custom_call.1} parent=5 // pred_region
        %s211 = ssub.s32 %s16, 1
        %s212 = sand.u32 %s67, 1
        %s213 = scalar_lea.sflag [#allocation3], %s212
        %s214 = sand.u32 %s67, 1
        %s215 = smul.addr %s214, 512
        %s216 = scalar_lea.vmem [#allocation2], %s215
        // Predicated region
        $region37: #{tpu_custom_call.1} parent=35 // pred_check
          %p217 = pneg %p80
        $region38: #{tpu_custom_call.1} parent=35 // pred_check_branch
          %219 = sbr.rel (%p217) target = $region40
        $region39: #{tpu_custom_call.1} parent=35 // pred_region
          %220 = dma.done %s213, 8192
        $region40: #{tpu_custom_call.1} parent=35 // pred_fallthru
          _
        %p221 = scmp.lt.s32.totalorder %s25, 1
        %s222 = scalar_select %p221, %s25, 1
        %s223 = smul.addr %s222, 32
        %s224 = smul.addr %s223, 4
        %s225 = scalar_lea.vmem %s0, %s224
        %p226 = pneg %p54
        %p227 = pneg %p51
        %s228 = sand.u32 %s67, 1
        %s229 = scalar_lea.sflag [#allocation3], %s228
        %s230 = sand.u32 %s67, 1
        %s231 = smul.addr %s230, 512
        %s232 = scalar_lea.vmem [#allocation2], %s231
        %p233 = pneg %p80
        %p234 = pneg %p77
        %p235 = pneg %p101
        %p236 = pneg %p98
        %p237 = pneg %p122
        %p238 = pneg %p119
        %p239 = pneg %p150
        %p240 = pneg %p147
        %s241 = sand.u32 %s137, 1
        %s242 = scalar_lea.sflag [#allocation4], %s241
        %s243 = sand.u32 %s137, 1
        %s244 = smul.addr %s243, 512
        %s245 = scalar_lea.vmem [#allocation5], %s244
        %p246 = scmp.lt.s32.totalorder %s25, 1
        %s247 = scalar_select %p246, %s25, 1
        %s248 = smul.addr %s247, 32
        %s249 = smul.addr %s248, 4
        %s250 = scalar_lea.vmem %s0, %s249
        %s251 = smul.u32 64, %s26
        %s252 = smul.u32 64, %s26
        %v254 = vld [vmem:[%s250] sm:$0xf]
        %v255 = vld [vmem:[%s250 + $0x4] sm:$0xf]
        %v256 = vld [vmem:[%s250 + $0x8] sm:$0xf]
        %v257 = vld [vmem:[%s250 + $0xc] sm:$0xf]
        %v258 = vld [vmem:[%s250 + $0x10] sm:$0xf]
        %v259 = vld [vmem:[%s250 + $0x14] sm:$0xf]
        %v260 = vld [vmem:[%s250 + $0x18] sm:$0xf]
        %v261 = vld [vmem:[%s250 + $0x1c] sm:$0xf]
        %v262 = vld [vmem:[%s250 + $0x20] sm:$0xf]
        %v263 = vld [vmem:[%s250 + $0x24] sm:$0xf]
        %v264 = vld [vmem:[%s250 + $0x28] sm:$0xf]
        %v265 = vld [vmem:[%s250 + $0x2c] sm:$0xf]
        %v266 = vld [vmem:[%s250 + $0x30] sm:$0xf]
        %v267 = vld [vmem:[%s250 + $0x34] sm:$0xf]
        %v268 = vld [vmem:[%s250 + $0x38] sm:$0xf]
        %v269 = vld [vmem:[%s250 + $0x3c] sm:$0xf]
        %v270 = vld [vmem:[%s250 + $0x40] sm:$0xf]
        %v271 = vld [vmem:[%s250 + $0x44] sm:$0xf]
        %v272 = vld [vmem:[%s250 + $0x48] sm:$0xf]
        %v273 = vld [vmem:[%s250 + $0x4c] sm:$0xf]
        %v274 = vld [vmem:[%s250 + $0x50] sm:$0xf]
        %v275 = vld [vmem:[%s250 + $0x54] sm:$0xf]
        %v276 = vld [vmem:[%s250 + $0x58] sm:$0xf]
        %v277 = vld [vmem:[%s250 + $0x5c] sm:$0xf]
        %v278 = vld [vmem:[%s250 + $0x60] sm:$0xf]
        %v279 = vld [vmem:[%s250 + $0x64] sm:$0xf]
        %v280 = vld [vmem:[%s250 + $0x68] sm:$0xf]
        %v281 = vld [vmem:[%s250 + $0x6c] sm:$0xf]
        %v282 = vld [vmem:[%s250 + $0x70] sm:$0xf]
        %v283 = vld [vmem:[%s250 + $0x74] sm:$0xf]
        %v284 = vld [vmem:[%s250 + $0x78] sm:$0xf]
        %v285 = vld [vmem:[%s250 + $0x7c] sm:$0xf]
        %v286 = vld [vmem:[%s2] sm:$0x3]
        %v319 = vunpack.c.l.b16 %v254
        %v320 = vunpack.c.l.b16 %v255
        %v321 = vunpack.c.l.b16 %v256
        %v322 = vunpack.c.l.b16 %v257
        %v323 = vunpack.c.l.b16 %v258
        %v324 = vunpack.c.l.b16 %v259
        %v325 = vunpack.c.l.b16 %v260
        %v326 = vunpack.c.l.b16 %v261
        %v327 = vunpack.c.l.b16 %v262
        %v328 = vunpack.c.l.b16 %v263
        %v329 = vunpack.c.l.b16 %v264
        %v330 = vunpack.c.l.b16 %v265
        %v331 = vunpack.c.l.b16 %v266
        %v332 = vunpack.c.l.b16 %v267
        %v333 = vunpack.c.l.b16 %v268
        %v334 = vunpack.c.l.b16 %v269
        %v335 = vunpack.c.l.b16 %v270
        %v336 = vunpack.c.l.b16 %v271
        %v337 = vunpack.c.l.b16 %v272
        %v338 = vunpack.c.l.b16 %v273
        %v339 = vunpack.c.l.b16 %v274
        %v340 = vunpack.c.l.b16 %v275
        %v341 = vunpack.c.l.b16 %v276
        %v342 = vunpack.c.l.b16 %v277
        %v343 = vunpack.c.l.b16 %v278
        %v344 = vunpack.c.l.b16 %v279
        %v345 = vunpack.c.l.b16 %v280
        %v346 = vunpack.c.l.b16 %v281
        %v347 = vunpack.c.l.b16 %v282
        %v348 = vunpack.c.l.b16 %v283
        %v349 = vunpack.c.l.b16 %v284
        %v350 = vunpack.c.l.b16 %v285
        %v351 = vpack.c.b16 %v320, %v319
        %v352 = vpack.c.b16 %v322, %v321
        %v353 = vpack.c.b16 %v324, %v323
        %v354 = vpack.c.b16 %v326, %v325
        %v355 = vpack.c.b16 %v328, %v327
        %v356 = vpack.c.b16 %v330, %v329
        %v357 = vpack.c.b16 %v332, %v331
        %v358 = vpack.c.b16 %v334, %v333
        %v359 = vpack.c.b16 %v336, %v335
        %v360 = vpack.c.b16 %v338, %v337
        %v361 = vpack.c.b16 %v340, %v339
        %v362 = vpack.c.b16 %v342, %v341
        %v363 = vpack.c.b16 %v344, %v343
        %v364 = vpack.c.b16 %v346, %v345
        %v365 = vpack.c.b16 %v348, %v347
        %v366 = vpack.c.b16 %v350, %v349
        %vm367 = vcmask 31744
        %v369 = vsel %vm367, %v351, 0
        %v372 = vsel %vm367, %v352, 0
        %v375 = vsel %vm367, %v353, 0
        %v378 = vsel %vm367, %v354, 0
        %v381 = vsel %vm367, %v355, 0
        %v384 = vsel %vm367, %v356, 0
        %v387 = vsel %vm367, %v357, 0
        %v390 = vsel %vm367, %v358, 0
        %v393 = vsel %vm367, %v359, 0
        %v396 = vsel %vm367, %v360, 0
        %v399 = vsel %vm367, %v361, 0
        %v402 = vsel %vm367, %v362, 0
        %v405 = vsel %vm367, %v363, 0
        %v408 = vsel %vm367, %v364, 0
        %v411 = vsel %vm367, %v365, 0
        %v414 = vsel %vm367, %v366, 0
        %vm416 = vcmask 1041408
        %v418 = vsel %vm416, %v286, 0
        %420 = vmatprep.subr.bf16.mxu0 0
        %421 = vmatpush1.bf16.msra.mxu0 0
        %422 = vmatprep.subr.bf16.mxu0 0
        %423 = vmatpush1.bf16.msra.mxu0 0
        %424 = vmatprep.subr.bf16.mxu0 0
        %425 = vmatpush1.bf16.msra.mxu0 0
        %426 = vmatprep.subr.bf16.mxu0 0
        %427 = vmatpush1.bf16.msra.mxu0 0
        %428 = vmatprep.subr.bf16.mxu0 0
        %429 = vmatpush1.bf16.msra.mxu0 0
        %430 = vmatprep.subr.bf16.mxu0 0
        %431 = vmatpush1.bf16.msra.mxu0 0
        %432 = vmatprep.subr.bf16.mxu0 0
        %433 = vmatpush1.bf16.msra.mxu0 0
        %434 = vmatprep.subr.bf16.mxu0 0
        %435 = vmatpush1.bf16.msra.mxu0 %v418
        %436 = vmatprep.subr.bf16.mxu0 0
        %437 = vmatpush2.bf16.msra.mxu0 0
        %438 = vmatprep.subr.bf16.mxu0 0
        %439 = vmatpush2.bf16.msra.mxu0 0
        %440 = vmatprep.subr.bf16.mxu0 0
        %441 = vmatpush2.bf16.msra.mxu0 0
        %442 = vmatprep.subr.bf16.mxu0 0
        %443 = vmatpush2.bf16.msra.mxu0 0
        %444 = vmatprep.subr.bf16.mxu0 0
        %445 = vmatpush2.bf16.msra.mxu0 0
        %446 = vmatprep.subr.bf16.mxu0 0
        %447 = vmatpush2.bf16.msra.mxu0 0
        %448 = vmatprep.subr.bf16.mxu0 0
        %449 = vmatpush2.bf16.msra.mxu0 0
        %450 = vmatprep.subr.bf16.mxu0 0
        %451 = vmatpush2.bf16.msra.mxu0 0
        %452 = vmatprep.mubr.bf16.mxu0 0
        %453 = vmatmul.mubr.bf16.gmra.mxu0 %v369
        %v454 = vpop.f32.mrf.mxu0
        %v455 = vadd.f32 0.0, %v454
        %v456 = vpop.f32.mrf.mxu0
        %v457 = vpop.f32.mrf.mxu0
        %v458 = vadd.f32 0.0, %v457
        %v459 = vpop.f32.mrf.mxu0
        %460 = vmatprep.mubr.bf16.mxu0 0
        %461 = vmatmul.mubr.bf16.gmra.mxu0 %v372
        %v462 = vpop.f32.mrf.mxu0
        %v463 = vadd.f32 0.0, %v462
        %v464 = vpop.f32.mrf.mxu0
        %v465 = vpop.f32.mrf.mxu0
        %v466 = vadd.f32 0.0, %v465
        %v467 = vpop.f32.mrf.mxu0
        %468 = vmatprep.mubr.bf16.mxu0 0
        %469 = vmatmul.mubr.bf16.gmra.mxu0 %v375
        %v470 = vpop.f32.mrf.mxu0
        %v471 = vadd.f32 0.0, %v470
        %v472 = vpop.f32.mrf.mxu0
        %v473 = vpop.f32.mrf.mxu0
        %v474 = vadd.f32 0.0, %v473
        %v475 = vpop.f32.mrf.mxu0
        %476 = vmatprep.mubr.bf16.mxu0 0
        %477 = vmatmul.mubr.bf16.gmra.mxu0 %v378
        %v478 = vpop.f32.mrf.mxu0
        %v479 = vadd.f32 0.0, %v478
        %v480 = vpop.f32.mrf.mxu0
        %v481 = vpop.f32.mrf.mxu0
        %v482 = vadd.f32 0.0, %v481
        %v483 = vpop.f32.mrf.mxu0
        %484 = vmatprep.mubr.bf16.mxu0 0
        %485 = vmatmul.mubr.bf16.gmra.mxu0 %v381
        %v486 = vpop.f32.mrf.mxu0
        %v487 = vadd.f32 0.0, %v486
        %v488 = vpop.f32.mrf.mxu0
        %v489 = vpop.f32.mrf.mxu0
        %v490 = vadd.f32 0.0, %v489
        %v491 = vpop.f32.mrf.mxu0
        %492 = vmatprep.mubr.bf16.mxu0 0
        %493 = vmatmul.mubr.bf16.gmra.mxu0 %v384
        %v494 = vpop.f32.mrf.mxu0
        %v495 = vadd.f32 0.0, %v494
        %v496 = vpop.f32.mrf.mxu0
        %v497 = vpop.f32.mrf.mxu0
        %v498 = vadd.f32 0.0, %v497
        %v499 = vpop.f32.mrf.mxu0
        %500 = vmatprep.mubr.bf16.mxu0 0
        %501 = vmatmul.mubr.bf16.gmra.mxu0 %v387
        %v502 = vpop.f32.mrf.mxu0
        %v503 = vadd.f32 0.0, %v502
        %v504 = vpop.f32.mrf.mxu0
        %v505 = vpop.f32.mrf.mxu0
        %v506 = vadd.f32 0.0, %v505
        %v507 = vpop.f32.mrf.mxu0
        %508 = vmatprep.mubr.bf16.mxu0 0
        %509 = vmatmul.mubr.bf16.gmra.mxu0 %v390
        %v510 = vpop.f32.mrf.mxu0
        %v511 = vadd.f32 0.0, %v510
        %v512 = vpop.f32.mrf.mxu0
        %v513 = vpop.f32.mrf.mxu0
        %v514 = vadd.f32 0.0, %v513
        %v515 = vpop.f32.mrf.mxu0
        %516 = vmatprep.mubr.bf16.mxu0 0
        %517 = vmatmul.mubr.bf16.gmra.mxu0 %v393
        %v518 = vpop.f32.mrf.mxu0
        %v519 = vadd.f32 0.0, %v518
        %v520 = vpop.f32.mrf.mxu0
        %v521 = vpop.f32.mrf.mxu0
        %v522 = vadd.f32 0.0, %v521
        %v523 = vpop.f32.mrf.mxu0
        %524 = vmatprep.mubr.bf16.mxu0 0
        %525 = vmatmul.mubr.bf16.gmra.mxu0 %v396
        %v526 = vpop.f32.mrf.mxu0
        %v527 = vadd.f32 0.0, %v526
        %v528 = vpop.f32.mrf.mxu0
        %v529 = vpop.f32.mrf.mxu0
        %v530 = vadd.f32 0.0, %v529
        %v531 = vpop.f32.mrf.mxu0
        %532 = vmatprep.mubr.bf16.mxu0 0
        %533 = vmatmul.mubr.bf16.gmra.mxu0 %v399
        %v534 = vpop.f32.mrf.mxu0
        %v535 = vadd.f32 0.0, %v534
        %v536 = vpop.f32.mrf.mxu0
        %v537 = vpop.f32.mrf.mxu0
        %v538 = vadd.f32 0.0, %v537
        %v539 = vpop.f32.mrf.mxu0
        %540 = vmatprep.mubr.bf16.mxu0 0
        %541 = vmatmul.mubr.bf16.gmra.mxu0 %v402
        %v542 = vpop.f32.mrf.mxu0
        %v543 = vadd.f32 0.0, %v542
        %v544 = vpop.f32.mrf.mxu0
        %v545 = vpop.f32.mrf.mxu0
        %v546 = vadd.f32 0.0, %v545
        %v547 = vpop.f32.mrf.mxu0
        %548 = vmatprep.mubr.bf16.mxu0 0
        %549 = vmatmul.mubr.bf16.gmra.mxu0 %v405
        %v550 = vpop.f32.mrf.mxu0
        %v551 = vadd.f32 0.0, %v550
        %v552 = vpop.f32.mrf.mxu0
        %v553 = vpop.f32.mrf.mxu0
        %v554 = vadd.f32 0.0, %v553
        %v555 = vpop.f32.mrf.mxu0
        %556 = vmatprep.mubr.bf16.mxu0 0
        %557 = vmatmul.mubr.bf16.gmra.mxu0 %v408
        %v558 = vpop.f32.mrf.mxu0
        %v559 = vadd.f32 0.0, %v558
        %v560 = vpop.f32.mrf.mxu0
        %v561 = vpop.f32.mrf.mxu0
        %v562 = vadd.f32 0.0, %v561
        %v563 = vpop.f32.mrf.mxu0
        %564 = vmatprep.mubr.bf16.mxu0 0
        %565 = vmatmul.mubr.bf16.gmra.mxu0 %v411
        %v566 = vpop.f32.mrf.mxu0
        %v567 = vadd.f32 0.0, %v566
        %v568 = vpop.f32.mrf.mxu0
        %v569 = vpop.f32.mrf.mxu0
        %v570 = vadd.f32 0.0, %v569
        %v571 = vpop.f32.mrf.mxu0
        %572 = vmatprep.mubr.bf16.mxu0 0
        %573 = vmatmul.mubr.bf16.gmra.mxu0 %v414
        %v574 = vpop.f32.mrf.mxu0
        %v575 = vadd.f32 0.0, %v574
        %v576 = vpop.f32.mrf.mxu0
        %v577 = vpop.f32.mrf.mxu0
        %v578 = vadd.f32 0.0, %v577
        %v579 = vpop.f32.mrf.mxu0
        %580 = vdwg.mxu0
        %v581 = vpack.c.bf16 %v458, %v455
        %v582 = vpack.c.bf16 %v466, %v463
        %v583 = vpack.c.bf16 %v474, %v471
        %v584 = vpack.c.bf16 %v482, %v479
        %v585 = vpack.c.bf16 %v490, %v487
        %v586 = vpack.c.bf16 %v498, %v495
        %v587 = vpack.c.bf16 %v506, %v503
        %v588 = vpack.c.bf16 %v514, %v511
        %v589 = vpack.c.bf16 %v522, %v519
        %v590 = vpack.c.bf16 %v530, %v527
        %v591 = vpack.c.bf16 %v538, %v535
        %v592 = vpack.c.bf16 %v546, %v543
        %v593 = vpack.c.bf16 %v554, %v551
        %v594 = vpack.c.bf16 %v562, %v559
        %v595 = vpack.c.bf16 %v570, %v567
        %v596 = vpack.c.bf16 %v578, %v575
        %v597 = vld [vmem:[%s216] sm:$0xff]
        %v598 = vld [vmem:[%s216 + $0x8] sm:$0xff]
        %v599 = vld [vmem:[%s216 + $0x10] sm:$0xff]
        %v600 = vld [vmem:[%s216 + $0x18] sm:$0xff]
        %v601 = vld [vmem:[%s216 + $0x20] sm:$0xff]
        %v602 = vld [vmem:[%s216 + $0x28] sm:$0xff]
        %v603 = vld [vmem:[%s216 + $0x30] sm:$0xff]
        %v604 = vld [vmem:[%s216 + $0x38] sm:$0xff]
        %v605 = vld [vmem:[%s216 + $0x40] sm:$0xff]
        %v606 = vld [vmem:[%s216 + $0x48] sm:$0xff]
        %v607 = vld [vmem:[%s216 + $0x50] sm:$0xff]
        %v608 = vld [vmem:[%s216 + $0x58] sm:$0xff]
        %v609 = vld [vmem:[%s216 + $0x60] sm:$0xff]
        %v610 = vld [vmem:[%s216 + $0x68] sm:$0xff]
        %v611 = vld [vmem:[%s216 + $0x70] sm:$0xff]
        %v612 = vld [vmem:[%s216 + $0x78] sm:$0xff]
        %v613 = vld [vmem:[%s216 + $0x80] sm:$0xff]
        %v614 = vld [vmem:[%s216 + $0x88] sm:$0xff]
        %v615 = vld [vmem:[%s216 + $0x90] sm:$0xff]
        %v616 = vld [vmem:[%s216 + $0x98] sm:$0xff]
        %v617 = vld [vmem:[%s216 + $0xa0] sm:$0xff]
        %v618 = vld [vmem:[%s216 + $0xa8] sm:$0xff]
        %v619 = vld [vmem:[%s216 + $0xb0] sm:$0xff]
        %v620 = vld [vmem:[%s216 + $0xb8] sm:$0xff]
        %v621 = vld [vmem:[%s216 + $0xc0] sm:$0xff]
        %v622 = vld [vmem:[%s216 + $0xc8] sm:$0xff]
        %v623 = vld [vmem:[%s216 + $0xd0] sm:$0xff]
        %v624 = vld [vmem:[%s216 + $0xd8] sm:$0xff]
        %v625 = vld [vmem:[%s216 + $0xe0] sm:$0xff]
        %v626 = vld [vmem:[%s216 + $0xe8] sm:$0xff]
        %v627 = vld [vmem:[%s216 + $0xf0] sm:$0xff]
        %v628 = vld [vmem:[%s216 + $0xf8] sm:$0xff]
        %v629 = vld [vmem:[%s216 + $0x100] sm:$0xff]
        %v630 = vld [vmem:[%s216 + $0x108] sm:$0xff]
        %v631 = vld [vmem:[%s216 + $0x110] sm:$0xff]
        %v632 = vld [vmem:[%s216 + $0x118] sm:$0xff]
        %v633 = vld [vmem:[%s216 + $0x120] sm:$0xff]
        %v634 = vld [vmem:[%s216 + $0x128] sm:$0xff]
        %v635 = vld [vmem:[%s216 + $0x130] sm:$0xff]
        %v636 = vld [vmem:[%s216 + $0x138] sm:$0xff]
        %v637 = vld [vmem:[%s216 + $0x140] sm:$0xff]
        %v638 = vld [vmem:[%s216 + $0x148] sm:$0xff]
        %v639 = vld [vmem:[%s216 + $0x150] sm:$0xff]
        %v640 = vld [vmem:[%s216 + $0x158] sm:$0xff]
        %v641 = vld [vmem:[%s216 + $0x160] sm:$0xff]
        %v642 = vld [vmem:[%s216 + $0x168] sm:$0xff]
        %v643 = vld [vmem:[%s216 + $0x170] sm:$0xff]
        %v644 = vld [vmem:[%s216 + $0x178] sm:$0xff]
        %v645 = vld [vmem:[%s216 + $0x180] sm:$0xff]
        %v646 = vld [vmem:[%s216 + $0x188] sm:$0xff]
        %v647 = vld [vmem:[%s216 + $0x190] sm:$0xff]
        %v648 = vld [vmem:[%s216 + $0x198] sm:$0xff]
        %v649 = vld [vmem:[%s216 + $0x1a0] sm:$0xff]
        %v650 = vld [vmem:[%s216 + $0x1a8] sm:$0xff]
        %v651 = vld [vmem:[%s216 + $0x1b0] sm:$0xff]
        %v652 = vld [vmem:[%s216 + $0x1b8] sm:$0xff]
        %v653 = vld [vmem:[%s216 + $0x1c0] sm:$0xff]
        %v654 = vld [vmem:[%s216 + $0x1c8] sm:$0xff]
        %v655 = vld [vmem:[%s216 + $0x1d0] sm:$0xff]
        %v656 = vld [vmem:[%s216 + $0x1d8] sm:$0xff]
        %v657 = vld [vmem:[%s216 + $0x1e0] sm:$0xff]
        %v658 = vld [vmem:[%s216 + $0x1e8] sm:$0xff]
        %v659 = vld [vmem:[%s216 + $0x1f0] sm:$0xff]
        %v660 = vld [vmem:[%s216 + $0x1f8] sm:$0xff]
        %v661 = vld [vmem:[%s3] sm:$0x1]
        %v663 = vlaneseq
        %v664 = vshrl.u32 %v663, 7
        %v665 = vsub.s32 0, %v664
        %v666 = vrot.slane %v661, %v665
        %v732 = vunpack.c.l.b16 %v597
        %v733 = vunpack.c.h.b16 %v597
        %v734 = vunpack.c.l.b16 %v598
        %v735 = vunpack.c.h.b16 %v598
        %v736 = vunpack.c.l.b16 %v599
        %v737 = vunpack.c.h.b16 %v599
        %v738 = vunpack.c.l.b16 %v600
        %v739 = vunpack.c.h.b16 %v600
        %v740 = vunpack.c.l.b16 %v601
        %v741 = vunpack.c.h.b16 %v601
        %v742 = vunpack.c.l.b16 %v602
        %v743 = vunpack.c.h.b16 %v602
        %v744 = vunpack.c.l.b16 %v603
        %v745 = vunpack.c.h.b16 %v603
        %v746 = vunpack.c.l.b16 %v604
        %v747 = vunpack.c.h.b16 %v604
        %v748 = vunpack.c.l.b16 %v605
        %v749 = vunpack.c.h.b16 %v605
        %v750 = vunpack.c.l.b16 %v606
        %v751 = vunpack.c.h.b16 %v606
        %v752 = vunpack.c.l.b16 %v607
        %v753 = vunpack.c.h.b16 %v607
        %v754 = vunpack.c.l.b16 %v608
        %v755 = vunpack.c.h.b16 %v608
        %v756 = vunpack.c.l.b16 %v609
        %v757 = vunpack.c.h.b16 %v609
        %v758 = vunpack.c.l.b16 %v610
        %v759 = vunpack.c.h.b16 %v610
        %v760 = vunpack.c.l.b16 %v611
        %v761 = vunpack.c.h.b16 %v611
        %v762 = vunpack.c.l.b16 %v612
        %v763 = vunpack.c.h.b16 %v612
        %v764 = vunpack.c.l.b16 %v613
        %v765 = vunpack.c.h.b16 %v613
        %v766 = vunpack.c.l.b16 %v614
        %v767 = vunpack.c.h.b16 %v614
        %v768 = vunpack.c.l.b16 %v615
        %v769 = vunpack.c.h.b16 %v615
        %v770 = vunpack.c.l.b16 %v616
        %v771 = vunpack.c.h.b16 %v616
        %v772 = vunpack.c.l.b16 %v617
        %v773 = vunpack.c.h.b16 %v617
        %v774 = vunpack.c.l.b16 %v618
        %v775 = vunpack.c.h.b16 %v618
        %v776 = vunpack.c.l.b16 %v619
        %v777 = vunpack.c.h.b16 %v619
        %v778 = vunpack.c.l.b16 %v620
        %v779 = vunpack.c.h.b16 %v620
        %v780 = vunpack.c.l.b16 %v621
        %v781 = vunpack.c.h.b16 %v621
        %v782 = vunpack.c.l.b16 %v622
        %v783 = vunpack.c.h.b16 %v622
        %v784 = vunpack.c.l.b16 %v623
        %v785 = vunpack.c.h.b16 %v623
        %v786 = vunpack.c.l.b16 %v624
        %v787 = vunpack.c.h.b16 %v624
        %v788 = vunpack.c.l.b16 %v625
        %v789 = vunpack.c.h.b16 %v625
        %v790 = vunpack.c.l.b16 %v626
        %v791 = vunpack.c.h.b16 %v626
        %v792 = vunpack.c.l.b16 %v627
        %v793 = vunpack.c.h.b16 %v627
        %v794 = vunpack.c.l.b16 %v628
        %v795 = vunpack.c.h.b16 %v628
        %v796 = vunpack.c.l.b16 %v629
        %v797 = vunpack.c.h.b16 %v629
        %v798 = vunpack.c.l.b16 %v630
        %v799 = vunpack.c.h.b16 %v630
        %v800 = vunpack.c.l.b16 %v631
        %v801 = vunpack.c.h.b16 %v631
        %v802 = vunpack.c.l.b16 %v632
        %v803 = vunpack.c.h.b16 %v632
        %v804 = vunpack.c.l.b16 %v633
        %v805 = vunpack.c.h.b16 %v633
        %v806 = vunpack.c.l.b16 %v634
        %v807 = vunpack.c.h.b16 %v634
        %v808 = vunpack.c.l.b16 %v635
        %v809 = vunpack.c.h.b16 %v635
        %v810 = vunpack.c.l.b16 %v636
        %v811 = vunpack.c.h.b16 %v636
        %v812 = vunpack.c.l.b16 %v637
        %v813 = vunpack.c.h.b16 %v637
        %v814 = vunpack.c.l.b16 %v638
        %v815 = vunpack.c.h.b16 %v638
        %v816 = vunpack.c.l.b16 %v639
        %v817 = vunpack.c.h.b16 %v639
        %v818 = vunpack.c.l.b16 %v640
        %v819 = vunpack.c.h.b16 %v640
        %v820 = vunpack.c.l.b16 %v641
        %v821 = vunpack.c.h.b16 %v641
        %v822 = vunpack.c.l.b16 %v642
        %v823 = vunpack.c.h.b16 %v642
        %v824 = vunpack.c.l.b16 %v643
        %v825 = vunpack.c.h.b16 %v643
        %v826 = vunpack.c.l.b16 %v644
        %v827 = vunpack.c.h.b16 %v644
        %v828 = vunpack.c.l.b16 %v645
        %v829 = vunpack.c.h.b16 %v645
        %v830 = vunpack.c.l.b16 %v646
        %v831 = vunpack.c.h.b16 %v646
        %v832 = vunpack.c.l.b16 %v647
        %v833 = vunpack.c.h.b16 %v647
        %v834 = vunpack.c.l.b16 %v648
        %v835 = vunpack.c.h.b16 %v648
        %v836 = vunpack.c.l.b16 %v649
        %v837 = vunpack.c.h.b16 %v649
        %v838 = vunpack.c.l.b16 %v650
        %v839 = vunpack.c.h.b16 %v650
        %v840 = vunpack.c.l.b16 %v651
        %v841 = vunpack.c.h.b16 %v651
        %v842 = vunpack.c.l.b16 %v652
        %v843 = vunpack.c.h.b16 %v652
        %v844 = vunpack.c.l.b16 %v653
        %v845 = vunpack.c.h.b16 %v653
        %v846 = vunpack.c.l.b16 %v654
        %v847 = vunpack.c.h.b16 %v654
        %v848 = vunpack.c.l.b16 %v655
        %v849 = vunpack.c.h.b16 %v655
        %v850 = vunpack.c.l.b16 %v656
        %v851 = vunpack.c.h.b16 %v656
        %v852 = vunpack.c.l.b16 %v657
        %v853 = vunpack.c.h.b16 %v657
        %v854 = vunpack.c.l.b16 %v658
        %v855 = vunpack.c.h.b16 %v658
        %v856 = vunpack.c.l.b16 %v659
        %v857 = vunpack.c.h.b16 %v659
        %v858 = vunpack.c.l.b16 %v660
        %v859 = vunpack.c.h.b16 %v660
        %v860 = vpack.c.b16 %v734, %v732
        %v861 = vpack.c.b16 %v735, %v733
        %v862 = vpack.c.b16 %v738, %v736
        %v863 = vpack.c.b16 %v739, %v737
        %v864 = vpack.c.b16 %v742, %v740
        %v865 = vpack.c.b16 %v743, %v741
        %v866 = vpack.c.b16 %v746, %v744
        %v867 = vpack.c.b16 %v747, %v745
        %v868 = vpack.c.b16 %v750, %v748
        %v869 = vpack.c.b16 %v751, %v749
        %v870 = vpack.c.b16 %v754, %v752
        %v871 = vpack.c.b16 %v755, %v753
        %v872 = vpack.c.b16 %v758, %v756
        %v873 = vpack.c.b16 %v759, %v757
        %v874 = vpack.c.b16 %v762, %v760
        %v875 = vpack.c.b16 %v763, %v761
        %v876 = vpack.c.b16 %v766, %v764
        %v877 = vpack.c.b16 %v767, %v765
        %v878 = vpack.c.b16 %v770, %v768
        %v879 = vpack.c.b16 %v771, %v769
        %v880 = vpack.c.b16 %v774, %v772
        %v881 = vpack.c.b16 %v775, %v773
        %v882 = vpack.c.b16 %v778, %v776
        %v883 = vpack.c.b16 %v779, %v777
        %v884 = vpack.c.b16 %v782, %v780
        %v885 = vpack.c.b16 %v783, %v781
        %v886 = vpack.c.b16 %v786, %v784
        %v887 = vpack.c.b16 %v787, %v785
        %v888 = vpack.c.b16 %v790, %v788
        %v889 = vpack.c.b16 %v791, %v789
        %v890 = vpack.c.b16 %v794, %v792
        %v891 = vpack.c.b16 %v795, %v793
        %v892 = vpack.c.b16 %v798, %v796
        %v893 = vpack.c.b16 %v799, %v797
        %v894 = vpack.c.b16 %v802, %v800
        %v895 = vpack.c.b16 %v803, %v801
        %v896 = vpack.c.b16 %v806, %v804
        %v897 = vpack.c.b16 %v807, %v805
        %v898 = vpack.c.b16 %v810, %v808
        %v899 = vpack.c.b16 %v811, %v809
        %v900 = vpack.c.b16 %v814, %v812
        %v901 = vpack.c.b16 %v815, %v813
        %v902 = vpack.c.b16 %v818, %v816
        %v903 = vpack.c.b16 %v819, %v817
        %v904 = vpack.c.b16 %v822, %v820
        %v905 = vpack.c.b16 %v823, %v821
        %v906 = vpack.c.b16 %v826, %v824
        %v907 = vpack.c.b16 %v827, %v825
        %v908 = vpack.c.b16 %v830, %v828
        %v909 = vpack.c.b16 %v831, %v829
        %v910 = vpack.c.b16 %v834, %v832
        %v911 = vpack.c.b16 %v835, %v833
        %v912 = vpack.c.b16 %v838, %v836
        %v913 = vpack.c.b16 %v839, %v837
        %v914 = vpack.c.b16 %v842, %v840
        %v915 = vpack.c.b16 %v843, %v841
        %v916 = vpack.c.b16 %v846, %v844
        %v917 = vpack.c.b16 %v847, %v845
        %v918 = vpack.c.b16 %v850, %v848
        %v919 = vpack.c.b16 %v851, %v849
        %v920 = vpack.c.b16 %v854, %v852
        %v921 = vpack.c.b16 %v855, %v853
        %v922 = vpack.c.b16 %v858, %v856
        %v923 = vpack.c.b16 %v859, %v857
        %988 = vmatprep.subr.bf16.mxu0 0
        %989 = vmatpush1.bf16.msra.mxu0 %v588
        %990 = vmatprep.subr.bf16.mxu0 0
        %991 = vmatpush1.bf16.msra.mxu0 %v587
        %992 = vmatprep.subr.bf16.mxu0 0
        %993 = vmatpush1.bf16.msra.mxu0 %v586
        %994 = vmatprep.subr.bf16.mxu0 0
        %995 = vmatpush1.bf16.msra.mxu0 %v585
        %996 = vmatprep.subr.bf16.mxu0 0
        %997 = vmatpush1.bf16.msra.mxu0 %v584
        %998 = vmatprep.subr.bf16.mxu0 0
        %999 = vmatpush1.bf16.msra.mxu0 %v583
        %1000 = vmatprep.subr.bf16.mxu0 0
        %1001 = vmatpush1.bf16.msra.mxu0 %v582
        %1002 = vmatprep.subr.bf16.mxu0 0
        %1003 = vmatpush1.bf16.msra.mxu0 %v581
        %1004 = vmatprep.subr.bf16.mxu0 0
        %1005 = vmatpush2.bf16.msra.mxu0 %v596
        %1006 = vmatprep.subr.bf16.mxu0 0
        %1007 = vmatpush2.bf16.msra.mxu0 %v595
        %1008 = vmatprep.subr.bf16.mxu0 0
        %1009 = vmatpush2.bf16.msra.mxu0 %v594
        %1010 = vmatprep.subr.bf16.mxu0 0
        %1011 = vmatpush2.bf16.msra.mxu0 %v593
        %1012 = vmatprep.subr.bf16.mxu0 0
        %1013 = vmatpush2.bf16.msra.mxu0 %v592
        %1014 = vmatprep.subr.bf16.mxu0 0
        %1015 = vmatpush2.bf16.msra.mxu0 %v591
        %1016 = vmatprep.subr.bf16.mxu0 0
        %1017 = vmatpush2.bf16.msra.mxu0 %v590
        %1018 = vmatprep.subr.bf16.mxu0 0
        %1019 = vmatpush2.bf16.msra.mxu0 %v589
        %1020 = vmatprep.mubr.bf16.mxu0 %v861
        %1021 = vmatmul.mubr.bf16.gmra.mxu0 %v860
        %v1022 = vpop.f32.mrf.mxu0
        %v1023 = vadd.f32 %v666, %v1022
        %v1024 = vpop.f32.mrf.mxu0
        %v1025 = vpop.f32.mrf.mxu0
        %v1026 = vadd.f32 %v666, %v1025
        %v1027 = vpop.f32.mrf.mxu0
        %1028 = vmatprep.mubr.bf16.mxu0 %v863
        %1029 = vmatmul.mubr.bf16.gmra.mxu0 %v862
        %v1030 = vpop.f32.mrf.mxu0
        %v1031 = vadd.f32 %v666, %v1030
        %v1032 = vpop.f32.mrf.mxu0
        %v1033 = vpop.f32.mrf.mxu0
        %v1034 = vadd.f32 %v666, %v1033
        %v1035 = vpop.f32.mrf.mxu0
        %1036 = vmatprep.mubr.bf16.mxu0 %v865
        %1037 = vmatmul.mubr.bf16.gmra.mxu0 %v864
        %v1038 = vpop.f32.mrf.mxu0
        %v1039 = vadd.f32 %v666, %v1038
        %v1040 = vpop.f32.mrf.mxu0
        %v1041 = vpop.f32.mrf.mxu0
        %v1042 = vadd.f32 %v666, %v1041
        %v1043 = vpop.f32.mrf.mxu0
        %1044 = vmatprep.mubr.bf16.mxu0 %v867
        %1045 = vmatmul.mubr.bf16.gmra.mxu0 %v866
        %v1046 = vpop.f32.mrf.mxu0
        %v1047 = vadd.f32 %v666, %v1046
        %v1048 = vpop.f32.mrf.mxu0
        %v1049 = vpop.f32.mrf.mxu0
        %v1050 = vadd.f32 %v666, %v1049
        %v1051 = vpop.f32.mrf.mxu0
        %1052 = vmatprep.mubr.bf16.mxu0 %v869
        %1053 = vmatmul.mubr.bf16.gmra.mxu0 %v868
        %v1054 = vpop.f32.mrf.mxu0
        %v1055 = vadd.f32 %v666, %v1054
        %v1056 = vpop.f32.mrf.mxu0
        %v1057 = vpop.f32.mrf.mxu0
        %v1058 = vadd.f32 %v666, %v1057
        %v1059 = vpop.f32.mrf.mxu0
        %1060 = vmatprep.mubr.bf16.mxu0 %v871
        %1061 = vmatmul.mubr.bf16.gmra.mxu0 %v870
        %v1062 = vpop.f32.mrf.mxu0
        %v1063 = vadd.f32 %v666, %v1062
        %v1064 = vpop.f32.mrf.mxu0
        %v1065 = vpop.f32.mrf.mxu0
        %v1066 = vadd.f32 %v666, %v1065
        %v1067 = vpop.f32.mrf.mxu0
        %1068 = vmatprep.mubr.bf16.mxu0 %v873
        %1069 = vmatmul.mubr.bf16.gmra.mxu0 %v872
        %v1070 = vpop.f32.mrf.mxu0
        %v1071 = vadd.f32 %v666, %v1070
        %v1072 = vpop.f32.mrf.mxu0
        %v1073 = vpop.f32.mrf.mxu0
        %v1074 = vadd.f32 %v666, %v1073
        %v1075 = vpop.f32.mrf.mxu0
        %1076 = vmatprep.mubr.bf16.mxu0 %v875
        %1077 = vmatmul.mubr.bf16.gmra.mxu0 %v874
        %v1078 = vpop.f32.mrf.mxu0
        %v1079 = vadd.f32 %v666, %v1078
        %v1080 = vpop.f32.mrf.mxu0
        %v1081 = vpop.f32.mrf.mxu0
        %v1082 = vadd.f32 %v666, %v1081
        %v1083 = vpop.f32.mrf.mxu0
        %1084 = vmatprep.mubr.bf16.mxu0 %v877
        %1085 = vmatmul.mubr.bf16.gmra.mxu0 %v876
        %v1086 = vpop.f32.mrf.mxu0
        %v1087 = vadd.f32 %v666, %v1086
        %v1088 = vpop.f32.mrf.mxu0
        %v1089 = vpop.f32.mrf.mxu0
        %v1090 = vadd.f32 %v666, %v1089
        %v1091 = vpop.f32.mrf.mxu0
        %1092 = vmatprep.mubr.bf16.mxu0 %v879
        %1093 = vmatmul.mubr.bf16.gmra.mxu0 %v878
        %v1094 = vpop.f32.mrf.mxu0
        %v1095 = vadd.f32 %v666, %v1094
        %v1096 = vpop.f32.mrf.mxu0
        %v1097 = vpop.f32.mrf.mxu0
        %v1098 = vadd.f32 %v666, %v1097
        %v1099 = vpop.f32.mrf.mxu0
        %1100 = vmatprep.mubr.bf16.mxu0 %v881
        %1101 = vmatmul.mubr.bf16.gmra.mxu0 %v880
        %v1102 = vpop.f32.mrf.mxu0
        %v1103 = vadd.f32 %v666, %v1102
        %v1104 = vpop.f32.mrf.mxu0
        %v1105 = vpop.f32.mrf.mxu0
        %v1106 = vadd.f32 %v666, %v1105
        %v1107 = vpop.f32.mrf.mxu0
        %1108 = vmatprep.mubr.bf16.mxu0 %v883
        %1109 = vmatmul.mubr.bf16.gmra.mxu0 %v882
        %v1110 = vpop.f32.mrf.mxu0
        %v1111 = vadd.f32 %v666, %v1110
        %v1112 = vpop.f32.mrf.mxu0
        %v1113 = vpop.f32.mrf.mxu0
        %v1114 = vadd.f32 %v666, %v1113
        %v1115 = vpop.f32.mrf.mxu0
        %1116 = vmatprep.mubr.bf16.mxu0 %v885
        %1117 = vmatmul.mubr.bf16.gmra.mxu0 %v884
        %v1118 = vpop.f32.mrf.mxu0
        %v1119 = vadd.f32 %v666, %v1118
        %v1120 = vpop.f32.mrf.mxu0
        %v1121 = vpop.f32.mrf.mxu0
        %v1122 = vadd.f32 %v666, %v1121
        %v1123 = vpop.f32.mrf.mxu0
        %1124 = vmatprep.mubr.bf16.mxu0 %v887
        %1125 = vmatmul.mubr.bf16.gmra.mxu0 %v886
        %v1126 = vpop.f32.mrf.mxu0
        %v1127 = vadd.f32 %v666, %v1126
        %v1128 = vpop.f32.mrf.mxu0
        %v1129 = vpop.f32.mrf.mxu0
        %v1130 = vadd.f32 %v666, %v1129
        %v1131 = vpop.f32.mrf.mxu0
        %1132 = vmatprep.mubr.bf16.mxu0 %v889
        %1133 = vmatmul.mubr.bf16.gmra.mxu0 %v888
        %v1134 = vpop.f32.mrf.mxu0
        %v1135 = vadd.f32 %v666, %v1134
        %v1136 = vpop.f32.mrf.mxu0
        %v1137 = vpop.f32.mrf.mxu0
        %v1138 = vadd.f32 %v666, %v1137
        %v1139 = vpop.f32.mrf.mxu0
        %1140 = vmatprep.mubr.bf16.mxu0 %v891
        %1141 = vmatmul.mubr.bf16.gmra.mxu0 %v890
        %v1142 = vpop.f32.mrf.mxu0
        %v1143 = vadd.f32 %v666, %v1142
        %v1144 = vpop.f32.mrf.mxu0
        %v1145 = vpop.f32.mrf.mxu0
        %v1146 = vadd.f32 %v666, %v1145
        %v1147 = vpop.f32.mrf.mxu0
        %1148 = vmatprep.mubr.bf16.mxu0 %v893
        %1149 = vmatmul.mubr.bf16.gmra.mxu0 %v892
        %v1150 = vpop.f32.mrf.mxu0
        %v1151 = vadd.f32 %v666, %v1150
        %v1152 = vpop.f32.mrf.mxu0
        %v1153 = vpop.f32.mrf.mxu0
        %v1154 = vadd.f32 %v666, %v1153
        %v1155 = vpop.f32.mrf.mxu0
        %1156 = vmatprep.mubr.bf16.mxu0 %v895
        %1157 = vmatmul.mubr.bf16.gmra.mxu0 %v894
        %v1158 = vpop.f32.mrf.mxu0
        %v1159 = vadd.f32 %v666, %v1158
        %v1160 = vpop.f32.mrf.mxu0
        %v1161 = vpop.f32.mrf.mxu0
        %v1162 = vadd.f32 %v666, %v1161
        %v1163 = vpop.f32.mrf.mxu0
        %1164 = vmatprep.mubr.bf16.mxu0 %v897
        %1165 = vmatmul.mubr.bf16.gmra.mxu0 %v896
        %v1166 = vpop.f32.mrf.mxu0
        %v1167 = vadd.f32 %v666, %v1166
        %v1168 = vpop.f32.mrf.mxu0
        %v1169 = vpop.f32.mrf.mxu0
        %v1170 = vadd.f32 %v666, %v1169
        %v1171 = vpop.f32.mrf.mxu0
        %1172 = vmatprep.mubr.bf16.mxu0 %v899
        %1173 = vmatmul.mubr.bf16.gmra.mxu0 %v898
        %v1174 = vpop.f32.mrf.mxu0
        %v1175 = vadd.f32 %v666, %v1174
        %v1176 = vpop.f32.mrf.mxu0
        %v1177 = vpop.f32.mrf.mxu0
        %v1178 = vadd.f32 %v666, %v1177
        %v1179 = vpop.f32.mrf.mxu0
        %1180 = vmatprep.mubr.bf16.mxu0 %v901
        %1181 = vmatmul.mubr.bf16.gmra.mxu0 %v900
        %v1182 = vpop.f32.mrf.mxu0
        %v1183 = vadd.f32 %v666, %v1182
        %v1184 = vpop.f32.mrf.mxu0
        %v1185 = vpop.f32.mrf.mxu0
        %v1186 = vadd.f32 %v666, %v1185
        %v1187 = vpop.f32.mrf.mxu0
        %1188 = vmatprep.mubr.bf16.mxu0 %v903
        %1189 = vmatmul.mubr.bf16.gmra.mxu0 %v902
        %v1190 = vpop.f32.mrf.mxu0
        %v1191 = vadd.f32 %v666, %v1190
        %v1192 = vpop.f32.mrf.mxu0
        %v1193 = vpop.f32.mrf.mxu0
        %v1194 = vadd.f32 %v666, %v1193
        %v1195 = vpop.f32.mrf.mxu0
        %1196 = vmatprep.mubr.bf16.mxu0 %v905
        %1197 = vmatmul.mubr.bf16.gmra.mxu0 %v904
        %v1198 = vpop.f32.mrf.mxu0
        %v1199 = vadd.f32 %v666, %v1198
        %v1200 = vpop.f32.mrf.mxu0
        %v1201 = vpop.f32.mrf.mxu0
        %v1202 = vadd.f32 %v666, %v1201
        %v1203 = vpop.f32.mrf.mxu0
        %1204 = vmatprep.mubr.bf16.mxu0 %v907
        %1205 = vmatmul.mubr.bf16.gmra.mxu0 %v906
        %v1206 = vpop.f32.mrf.mxu0
        %v1207 = vadd.f32 %v666, %v1206
        %v1208 = vpop.f32.mrf.mxu0
        %v1209 = vpop.f32.mrf.mxu0
        %v1210 = vadd.f32 %v666, %v1209
        %v1211 = vpop.f32.mrf.mxu0
        %1212 = vmatprep.mubr.bf16.mxu0 %v909
        %1213 = vmatmul.mubr.bf16.gmra.mxu0 %v908
        %v1214 = vpop.f32.mrf.mxu0
        %v1215 = vadd.f32 %v666, %v1214
        %v1216 = vpop.f32.mrf.mxu0
        %v1217 = vpop.f32.mrf.mxu0
        %v1218 = vadd.f32 %v666, %v1217
        %v1219 = vpop.f32.mrf.mxu0
        %1220 = vmatprep.mubr.bf16.mxu0 %v911
        %1221 = vmatmul.mubr.bf16.gmra.mxu0 %v910
        %v1222 = vpop.f32.mrf.mxu0
        %v1223 = vadd.f32 %v666, %v1222
        %v1224 = vpop.f32.mrf.mxu0
        %v1225 = vpop.f32.mrf.mxu0
        %v1226 = vadd.f32 %v666, %v1225
        %v1227 = vpop.f32.mrf.mxu0
        %1228 = vmatprep.mubr.bf16.mxu0 %v913
        %1229 = vmatmul.mubr.bf16.gmra.mxu0 %v912
        %v1230 = vpop.f32.mrf.mxu0
        %v1231 = vadd.f32 %v666, %v1230
        %v1232 = vpop.f32.mrf.mxu0
        %v1233 = vpop.f32.mrf.mxu0
        %v1234 = vadd.f32 %v666, %v1233
        %v1235 = vpop.f32.mrf.mxu0
        %1236 = vmatprep.mubr.bf16.mxu0 %v915
        %1237 = vmatmul.mubr.bf16.gmra.mxu0 %v914
        %v1238 = vpop.f32.mrf.mxu0
        %v1239 = vadd.f32 %v666, %v1238
        %v1240 = vpop.f32.mrf.mxu0
        %v1241 = vpop.f32.mrf.mxu0
        %v1242 = vadd.f32 %v666, %v1241
        %v1243 = vpop.f32.mrf.mxu0
        %1244 = vmatprep.mubr.bf16.mxu0 %v917
        %1245 = vmatmul.mubr.bf16.gmra.mxu0 %v916
        %v1246 = vpop.f32.mrf.mxu0
        %v1247 = vadd.f32 %v666, %v1246
        %v1248 = vpop.f32.mrf.mxu0
        %v1249 = vpop.f32.mrf.mxu0
        %v1250 = vadd.f32 %v666, %v1249
        %v1251 = vpop.f32.mrf.mxu0
        %1252 = vmatprep.mubr.bf16.mxu0 %v919
        %1253 = vmatmul.mubr.bf16.gmra.mxu0 %v918
        %v1254 = vpop.f32.mrf.mxu0
        %v1255 = vadd.f32 %v666, %v1254
        %v1256 = vpop.f32.mrf.mxu0
        %v1257 = vpop.f32.mrf.mxu0
        %v1258 = vadd.f32 %v666, %v1257
        %v1259 = vpop.f32.mrf.mxu0
        %1260 = vmatprep.mubr.bf16.mxu0 %v921
        %1261 = vmatmul.mubr.bf16.gmra.mxu0 %v920
        %v1262 = vpop.f32.mrf.mxu0
        %v1263 = vadd.f32 %v666, %v1262
        %v1264 = vpop.f32.mrf.mxu0
        %v1265 = vpop.f32.mrf.mxu0
        %v1266 = vadd.f32 %v666, %v1265
        %v1267 = vpop.f32.mrf.mxu0
        %1268 = vmatprep.mubr.bf16.mxu0 %v923
        %1269 = vmatmul.mubr.bf16.gmra.mxu0 %v922
        %v1270 = vpop.f32.mrf.mxu0
        %v1271 = vadd.f32 %v666, %v1270
        %v1272 = vpop.f32.mrf.mxu0
        %v1273 = vpop.f32.mrf.mxu0
        %v1274 = vadd.f32 %v666, %v1273
        %v1275 = vpop.f32.mrf.mxu0
        %1276 = vdwg.mxu0
        %1277 = vst [vmem:[%s245] sm:$0xff] %v1023
        %1278 = vst [vmem:[%s245 + $0x8] sm:$0xff] %v1026
        %1279 = vst [vmem:[%s245 + $0x10] sm:$0xff] %v1031
        %1280 = vst [vmem:[%s245 + $0x18] sm:$0xff] %v1034
        %1281 = vst [vmem:[%s245 + $0x20] sm:$0xff] %v1039
        %1282 = vst [vmem:[%s245 + $0x28] sm:$0xff] %v1042
        %1283 = vst [vmem:[%s245 + $0x30] sm:$0xff] %v1047
        %1284 = vst [vmem:[%s245 + $0x38] sm:$0xff] %v1050
        %1285 = vst [vmem:[%s245 + $0x40] sm:$0xff] %v1055
        %1286 = vst [vmem:[%s245 + $0x48] sm:$0xff] %v1058
        %1287 = vst [vmem:[%s245 + $0x50] sm:$0xff] %v1063
        %1288 = vst [vmem:[%s245 + $0x58] sm:$0xff] %v1066
        %1289 = vst [vmem:[%s245 + $0x60] sm:$0xff] %v1071
        %1290 = vst [vmem:[%s245 + $0x68] sm:$0xff] %v1074
        %1291 = vst [vmem:[%s245 + $0x70] sm:$0xff] %v1079
        %1292 = vst [vmem:[%s245 + $0x78] sm:$0xff] %v1082
        %1293 = vst [vmem:[%s245 + $0x80] sm:$0xff] %v1087
        %1294 = vst [vmem:[%s245 + $0x88] sm:$0xff] %v1090
        %1295 = vst [vmem:[%s245 + $0x90] sm:$0xff] %v1095
        %1296 = vst [vmem:[%s245 + $0x98] sm:$0xff] %v1098
        %1297 = vst [vmem:[%s245 + $0xa0] sm:$0xff] %v1103
        %1298 = vst [vmem:[%s245 + $0xa8] sm:$0xff] %v1106
        %1299 = vst [vmem:[%s245 + $0xb0] sm:$0xff] %v1111
        %1300 = vst [vmem:[%s245 + $0xb8] sm:$0xff] %v1114
        %1301 = vst [vmem:[%s245 + $0xc0] sm:$0xff] %v1119
        %1302 = vst [vmem:[%s245 + $0xc8] sm:$0xff] %v1122
        %1303 = vst [vmem:[%s245 + $0xd0] sm:$0xff] %v1127
        %1304 = vst [vmem:[%s245 + $0xd8] sm:$0xff] %v1130
        %1305 = vst [vmem:[%s245 + $0xe0] sm:$0xff] %v1135
        %1306 = vst [vmem:[%s245 + $0xe8] sm:$0xff] %v1138
        %1307 = vst [vmem:[%s245 + $0xf0] sm:$0xff] %v1143
        %1308 = vst [vmem:[%s245 + $0xf8] sm:$0xff] %v1146
        %1309 = vst [vmem:[%s245 + $0x100] sm:$0xff] %v1151
        %1310 = vst [vmem:[%s245 + $0x108] sm:$0xff] %v1154
        %1311 = vst [vmem:[%s245 + $0x110] sm:$0xff] %v1159
        %1312 = vst [vmem:[%s245 + $0x118] sm:$0xff] %v1162
        %1313 = vst [vmem:[%s245 + $0x120] sm:$0xff] %v1167
        %1314 = vst [vmem:[%s245 + $0x128] sm:$0xff] %v1170
        %1315 = vst [vmem:[%s245 + $0x130] sm:$0xff] %v1175
        %1316 = vst [vmem:[%s245 + $0x138] sm:$0xff] %v1178
        %1317 = vst [vmem:[%s245 + $0x140] sm:$0xff] %v1183
        %1318 = vst [vmem:[%s245 + $0x148] sm:$0xff] %v1186
        %1319 = vst [vmem:[%s245 + $0x150] sm:$0xff] %v1191
        %1320 = vst [vmem:[%s245 + $0x158] sm:$0xff] %v1194
        %1321 = vst [vmem:[%s245 + $0x160] sm:$0xff] %v1199
        %1322 = vst [vmem:[%s245 + $0x168] sm:$0xff] %v1202
        %1323 = vst [vmem:[%s245 + $0x170] sm:$0xff] %v1207
        %1324 = vst [vmem:[%s245 + $0x178] sm:$0xff] %v1210
        %1325 = vst [vmem:[%s245 + $0x180] sm:$0xff] %v1215
        %1326 = vst [vmem:[%s245 + $0x188] sm:$0xff] %v1218
        %1327 = vst [vmem:[%s245 + $0x190] sm:$0xff] %v1223
        %1328 = vst [vmem:[%s245 + $0x198] sm:$0xff] %v1226
        %1329 = vst [vmem:[%s245 + $0x1a0] sm:$0xff] %v1231
        %1330 = vst [vmem:[%s245 + $0x1a8] sm:$0xff] %v1234
        %1331 = vst [vmem:[%s245 + $0x1b0] sm:$0xff] %v1239
        %1332 = vst [vmem:[%s245 + $0x1b8] sm:$0xff] %v1242
        %1333 = vst [vmem:[%s245 + $0x1c0] sm:$0xff] %v1247
        %1334 = vst [vmem:[%s245 + $0x1c8] sm:$0xff] %v1250
        %1335 = vst [vmem:[%s245 + $0x1d0] sm:$0xff] %v1255
        %1336 = vst [vmem:[%s245 + $0x1d8] sm:$0xff] %v1258
        %1337 = vst [vmem:[%s245 + $0x1e0] sm:$0xff] %v1263
        %1338 = vst [vmem:[%s245 + $0x1e8] sm:$0xff] %v1266
        %1339 = vst [vmem:[%s245 + $0x1f0] sm:$0xff] %v1271
        %1340 = vst [vmem:[%s245 + $0x1f8] sm:$0xff] %v1274
        %s1341 = sand.u32 %s137, 1
        %s1342 = scalar_lea.sflag [#allocation4], %s1341
        %s1343 = sand.u32 %s137, 1
        %s1344 = smul.addr %s1343, 512
        %s1345 = scalar_lea.vmem [#allocation5], %s1344
        // Predicated region
        $region41: #{tpu_custom_call.1} parent=35 // pred_check
          %p1346 = pneg %p147
        $region42: #{tpu_custom_call.1} parent=35 // pred_check_branch
          %1348 = sbr.rel (%p1346) target = $region44
        $region43: #{tpu_custom_call.1} parent=35 // pred_region
          %s1349 = smul.u32 64, %s26
          %s1351 = ssub.s32 8192, 8192
          %1352 = vsyncadd %s1342, %s1351
          %s1353 = smul.addr %s25, 128
          %s1354 = sadd.s32 %s1349, %s1353
          %s1355 = smul.addr %s1354, 128
          %s1356 = scalar_lea.hbm %s4, %s1355
          %s1357 = sshll.u32 %s1345, 4
          %s1358 = int_to_ptr.vmem [resolvable:$true] %s1357
          %1363 = dma.vmem_to_hbm [thread:$0]  %s1358, 8192, %s1356, %s1342, 128, 128, 8
        $region44: #{tpu_custom_call.1} parent=35 // pred_fallthru
          _
      $region36: #{tpu_custom_call.1} parent=5 // pred_fallthru
        _
      %p1364 = scmp.le.s32.totalorder 2, %s16
      // Predicated region
      $region45: #{tpu_custom_call.1} parent=5 // pred_check
        %p1365 = pneg %p1364
      $region46: #{tpu_custom_call.1} parent=5 // pred_check_branch
        %1367 = sbr.rel (%p1365) target = $region48
      $region47: #{tpu_custom_call.1} parent=5 // pred_region
        %s1368 = ssub.s32 %s16, 2
        // Predicated region
        $region49: #{tpu_custom_call.1} parent=47 // pred_check
          %p1369 = pneg %p153
        $region50: #{tpu_custom_call.1} parent=47 // pred_check_branch
          %1371 = sbr.rel (%p1369) target = $region52
        $region51: #{tpu_custom_call.1} parent=47 // pred_region
          %s1372 = sand.u32 %s138, 1
          %s1373 = scalar_lea.sflag [#allocation4], %s1372
          %s1374 = sand.u32 %s138, 1
          %s1375 = smul.addr %s1374, 512
          %s1376 = scalar_lea.vmem [#allocation5], %s1375
          %1377 = dma.done %s1373, 8192
        $region52: #{tpu_custom_call.1} parent=47 // pred_fallthru
          _
      $region48: #{tpu_custom_call.1} parent=5 // pred_fallthru
        _
    $region6: #{tpu_custom_call.1} parent=1 // loop_footer
      %s20 = sadd.s32 1, %s16
    $region7: #{tpu_custom_call.1} parent=1 // loop_footer_branch
      %15 = sbr.rel target = $region3
    $region8: #{tpu_custom_call.1} parent=1 // loop_exit
      _
    %1378 = vsyncpa [#allocation3], 1
    %s1379 = scalar_lea.sflag [#allocation3], 1
    %1380 = vsyncpa %s1379, 1
    %1381 = vsyncpa [#allocation4], 1
    %s1382 = scalar_lea.sflag [#allocation4], 1
    %1383 = vsyncpa %s1382, 1

</llo_original>
